<compile_context>
chip_gen: v6e
topology: v6e:2x2x1
jax: 0.10.0
libtpu: 0.0.40
codegen_flags: <defaults>
</compile_context>

<pallas_src>
import functools
import math

import jax
import jax.numpy as jnp
from jax import lax
from jax.experimental import pallas as pl
from jax.experimental.pallas import tpu as pltpu


# --------------------------------------------------------------------------
# Kernels
# --------------------------------------------------------------------------
def conv_tanh_kernel(w_ref, b_ref, p_ref, o_ref):
    """o = tanh(W @ patches + b) for one pixel tile.

    w_ref: (Cout, Cin*K*K)   resident weights
    b_ref: (Cout, 1)         resident bias
    p_ref: (Cin*K*K, TP)     im2col patch tile
    o_ref: (Cout, TP)
    """
    acc = jnp.dot(w_ref[...], p_ref[...], preferred_element_type=jnp.float32)
    o_ref[...] = jnp.tanh(acc + b_ref[...])


def conv_attn_kernel(w_ref, p_ref, o_ref, *, C, ss):
    """Fused conv3 + pixel-shuffle channel-softmax attention.

    w_ref: (2*C*ss, S*K*K)   resident conv3 weights (no bias)
    p_ref: (S*K*K, TP)       im2col patch tile of the tanh(conv2) features
    o_ref: (ss, TP)          one row per sub-pixel slot (dy*s + dx)
    """
    conv = jnp.dot(w_ref[...], p_ref[...], preferred_element_type=jnp.float32)

    v = conv[0:C * ss]                 # value channels, rows c*ss + slot
    k = conv[C * ss:2 * C * ss]        # key   channels, rows c*ss + slot
    logits = k * k                     # (C*ss, TP)

    # per-slot max over the C channels (rows spaced ss apart) — VPU only
    m = logits[0:ss]
    for c in range(1, C):
        m = jnp.maximum(m, logits[c * ss:(c + 1) * ss])

    # single full-block exp (one EUP pass) + single full-block value weighting
    e = jnp.exp(logits - jnp.concatenate([m] * C, axis=0))
    ve = v * e

    den = e[0:ss]
    num = ve[0:ss]
    for c in range(1, C):
        den = den + e[c * ss:(c + 1) * ss]
        num = num + ve[c * ss:(c + 1) * ss]

    o_ref[...] = num / den             # (ss, TP)


# --------------------------------------------------------------------------
# Wrapper glue
# --------------------------------------------------------------------------
def _round_up(v, m):
    return ((v + m - 1) // m) * m


def _im2col_cm(f, K, pad):
    """Channel-major im2col.

    f: (Cf, N, H, W) -> (Cf*K*K, N*H*W); row = cf*K*K + dy*K + dx.
    Built as a stack of shifted views (no transpose needed), so XLA lowers it
    to simple strided copies.
    """
    Cf, N, H, W = f.shape
    fp = jnp.pad(f, ((0, 0), (0, 0), (pad, pad), (pad, pad)))
    taps = jnp.stack([fp[:, :, dy:dy + H, dx:dx + W]
                      for dy in range(K) for dx in range(K)],
                     axis=1)                       # (Cf, K*K, N, H, W)
    return taps.reshape(Cf * K * K, N * H * W)


def _conv_tanh_pallas(patches_pad, w2d, bias, tile_p):
    Kin, Ppad = patches_pad.shape
    Cout = w2d.shape[0]
    return pl.pallas_call(
        conv_tanh_kernel,
        out_shape=jax.ShapeDtypeStruct((Cout, Ppad), jnp.float32),
        grid_spec=pltpu.PrefetchScalarGridSpec(
            num_scalar_prefetch=0,
            grid=(Ppad // tile_p,),
            in_specs=[
                pl.BlockSpec((Cout, Kin), lambda i: (0, 0)),     # weights, resident
                pl.BlockSpec((Cout, 1), lambda i: (0, 0)),       # bias, resident
                pl.BlockSpec((Kin, tile_p), lambda i: (0, i)),   # pixel tile
            ],
            out_specs=pl.BlockSpec((Cout, tile_p), lambda i: (0, i)),
        ),
        compiler_params=pltpu.CompilerParams(
            dimension_semantics=("parallel",)),
    )(w2d, bias, patches_pad)


def edgesr_cnn_forward(x, params, *, C, D, S, s, tile_p=512):
    """x: (N, 1, H, W) f32 -> (N, 1, H*s, W*s).  params = (w1, b1, w2, b2, w3)."""
    w1, b1, w2, b2, w3 = params
    N, Cin, H, W = x.shape
    assert Cin == 1
    ss = s * s
    OC = 2 * ss * C
    P = N * H * W

    # lane-dense tiles: multiple of 128, never wider than the padded pixel axis
    tile_p = max(128, (tile_p // 128) * 128)
    tile_p = min(tile_p, _round_up(P, 128))
    Ppad = _round_up(P, tile_p)
    pad_cols = Ppad - P

    def pad_p(a):
        return jnp.pad(a, ((0, 0), (0, pad_cols))) if pad_cols else a

    x_cm = x.astype(jnp.float32).transpose(1, 0, 2, 3)           # (1, N, H, W)

    # ---- stage 1: 5x5 conv (1 -> D) + tanh ------------------------------
    p1 = pad_p(_im2col_cm(x_cm, 5, 2))
    f1 = _conv_tanh_pallas(p1,
                           w1.reshape(D, 25).astype(jnp.float32),
                           b1.reshape(D, 1).astype(jnp.float32), tile_p)
    f1 = f1[:, :P].reshape(D, N, H, W)                           # channel-major

    # ---- stage 2: 3x3 conv (D -> S) + tanh ------------------------------
    p2 = pad_p(_im2col_cm(f1, 3, 1))
    f2 = _conv_tanh_pallas(p2,
                           w2.reshape(S, D * 9).astype(jnp.float32),
                           b2.reshape(S, 1).astype(jnp.float32), tile_p)
    f2 = f2[:, :P].reshape(S, N, H, W)                           # channel-major

    # ---- stage 3: 3x3 conv (S -> 2*C*s*s) + softmax attention, fused ----
    p3 = pad_p(_im2col_cm(f2, 3, 1))
    kernel = functools.partial(conv_attn_kernel, C=C, ss=ss)
    out = pl.pallas_call(
        kernel,
        out_shape=jax.ShapeDtypeStruct((ss, Ppad), jnp.float32),
        grid_spec=pltpu.PrefetchScalarGridSpec(
            num_scalar_prefetch=0,
            grid=(Ppad // tile_p,),
            in_specs=[
                pl.BlockSpec((OC, S * 9), lambda i: (0, 0)),      # weights, resident
                pl.BlockSpec((S * 9, tile_p), lambda i: (0, i)),  # pixel tile
            ],
            out_specs=pl.BlockSpec((ss, tile_p), lambda i: (0, i)),
        ),
        compiler_params=pltpu.CompilerParams(
            dimension_semantics=("parallel",)),
    )(w3.reshape(OC, S * 9).astype(jnp.float32), p3)

    # pixel-shuffle assembly of the single-channel output:
    # out[dy*s+dx, n*H*W + y*W + x] -> hr[n, 0, y*s+dy, x*s+dx]
    out = out[:, :P]
    hr = (out.reshape(s, s, N, H, W)
             .transpose(2, 3, 0, 4, 1)            # (N, H, s, W, s)
             .reshape(N, 1, H * s, W * s))
    return hr


# --------------------------------------------------------------------------
# Pure-JAX reference mirroring the PyTorch forward (for validation)
# --------------------------------------------------------------------------
def ref_forward(x, params, *, C, D, S, s):
    w1, b1, w2, b2, w3 = params
    N, _, H, W = x.shape

    def conv(inp, w, pad, b=None):
        out = lax.conv_general_dilated(
            inp, w, window_strides=(1, 1), padding=[(pad, pad), (pad, pad)],
            dimension_numbers=('NCHW', 'OIHW', 'NCHW'))
        if b is not None:
            out = out + b.reshape(1, -1, 1, 1)
        return out

    f = jnp.tanh(conv(x, w1, 2, b1))
    f = jnp.tanh(conv(f, w2, 1, b2))
    f = conv(f, w3, 1)
    ps = (f.reshape(N, 2 * C, s, s, H, W)         # PixelShuffle(s)
            .transpose(0, 1, 4, 2, 5, 3)
            .reshape(N, 2 * C, H * s, W * s))
    v, k = ps[:, :C], ps[:, C:]
    sm = jax.nn.softmax(k * k, axis=1)
    return jnp.sum(v * sm, axis=1, keepdims=True)


if __name__ == "__main__":
    # model_id = 'eSR-CNN_s2_C4_D4_S8'
    s, C, D, S = 2, 4, 4, 8
    OC = 2 * s * s * C

    key = jax.random.PRNGKey(0)
    k1, k2, k3, kb1, kb2, kx1, kx2 = jax.random.split(key, 7)

    def xavier_normal(k, shape):
        fan_out = shape[0] * shape[2] * shape[3]
        fan_in = shape[1] * shape[2] * shape[3]
        std = math.sqrt(2.0 / (fan_in + fan_out))
        return std * jax.random.normal(k, shape, jnp.float32)

    # xavier_normal_ init + center tap of input-channel 0 forced to 1.0
    w1 = xavier_normal(k1, (D, 1, 5, 5)).at[:, 0, 2, 2].set(1.0)
    w2 = xavier_normal(k2, (S, D, 3, 3)).at[:, 0, 1, 1].set(1.0)
    w3 = xavier_normal(k3, (OC, S, 3, 3)).at[:, 0, 1, 1].set(1.0)
    b1 = 0.05 * jax.random.normal(kb1, (D,), jnp.float32)
    b2 = 0.05 * jax.random.normal(kb2, (S,), jnp.float32)
    params = (w1, b1, w2, b2, w3)

    fwd = jax.jit(edgesr_cnn_forward,
                  static_argnames=("C", "D", "S", "s", "tile_p"))

    # case 1: P divisible by the tile (multi-step grid, no padding)
    # case 2: P not divisible (exercises the pad/mask tail path + auto-shrink)
    cases = (
        ("16x16", jax.random.normal(kx1, (2, 1, 16, 16), jnp.float32), 256),
        ("12x12", jax.random.normal(kx2, (1, 1, 12, 12), jnp.float32), 512),
    )
    for name, x, tp in cases:
        out = jax.block_until_ready(
            fwd(x, params, C=C, D=D, S=S, s=s, tile_p=tp))
        ref = jax.block_until_ready(ref_forward(x, params, C=C, D=D, S=S, s=s))
        N, _, H, W = x.shape
        assert out.shape == (N, 1, H * s, W * s), out.shape
        err = jnp.max(jnp.abs(out - ref))
        assert jnp.allclose(out, ref, atol=1e-3, rtol=1e-3), \
            f"{name}: max abs err {err}"

    print("KERNEL_OK")
</pallas_src>

<mosaic_0001>
module attributes {stable_mosaic.version = 11 : i64} {
  func.func @conv_tanh_kernel(%arg0: i32, %arg1: memref<4x25xf32, #tpu.memory_space<vmem>>, %arg2: memref<4x1xf32, #tpu.memory_space<vmem>>, %arg3: memref<25x256xf32, #tpu.memory_space<vmem>>, %arg4: memref<4x256xf32, #tpu.memory_space<vmem>>) attributes {dimension_semantics = [#tpu.dimension_semantics<parallel>], iteration_bounds = array<i64: 2>, scalar_prefetch = 0 : i64, scratch_operands = 0 : i64, tpu.core_type = #tpu.core_type<tc>, window_params = [{pipeline_mode = #tpu.pipeline_mode<synchronous>, transform_indices = @transform_0, window_bounds = array<i64: 4, 25>}, {pipeline_mode = #tpu.pipeline_mode<synchronous>, transform_indices = @transform_1, window_bounds = array<i64: 4, 1>}, {transform_indices = @transform_2, window_bounds = array<i64: 25, 256>}, {transform_indices = @transform_3, window_bounds = array<i64: 4, 256>}]} {
    %c0 = arith.constant 0 : index
    %c0_0 = arith.constant 0 : index
    %0 = vector.load %arg1[%c0, %c0_0] : memref<4x25xf32, #tpu.memory_space<vmem>>, vector<4x25xf32>
    %c0_1 = arith.constant 0 : index
    %c0_2 = arith.constant 0 : index
    %1 = vector.load %arg3[%c0_1, %c0_2] : memref<25x256xf32, #tpu.memory_space<vmem>>, vector<25x256xf32>
    %cst = arith.constant dense<0.000000e+00> : vector<4x256xf32>
    %2 = tpu.matmul %0, %1, %cst {dimension_numbers = #tpu.dot_dimension_numbers<[1], [0], [0], [1], [0, 0, 1, 1], [], []>} : vector<4x25xf32>, vector<25x256xf32>, vector<4x256xf32> -> vector<4x256xf32>
    %c0_3 = arith.constant 0 : index
    %c0_4 = arith.constant 0 : index
    %3 = vector.load %arg2[%c0_3, %c0_4] : memref<4x1xf32, #tpu.memory_space<vmem>>, vector<4x1xf32>
    %4 = vector.broadcast %3 : vector<4x1xf32> to vector<4x256xf32>
    %5 = arith.addf %2, %4 : vector<4x256xf32>
    %6 = math.tanh %5 : vector<4x256xf32>
    %c0_5 = arith.constant 0 : index
    %c0_6 = arith.constant 0 : index
    %7 = vector.load %arg4[%c0_5, %c0_6] : memref<4x256xf32, #tpu.memory_space<vmem>>, vector<4x256xf32>
    tpu.vector_store %arg4[%c0_5, %c0_6], %6 {strides = array<i32>} : memref<4x256xf32, #tpu.memory_space<vmem>>, vector<4x256xf32>,
    return
  }
  func.func @transform_0(%arg0: i32) -> (i32, i32) {
    %c0_i32 = arith.constant 0 : i32
    %c0_i32_0 = arith.constant 0 : i32
    %c0_i32_1 = arith.constant 0 : i32
    return %c0_i32, %c0_i32_0 : i32, i32
  }
  func.func @transform_1(%arg0: i32) -> (i32, i32) {
    %c0_i32 = arith.constant 0 : i32
    %c0_i32_0 = arith.constant 0 : i32
    %c0_i32_1 = arith.constant 0 : i32
    return %c0_i32, %c0_i32_0 : i32, i32
  }
  func.func @transform_2(%arg0: i32) -> (i32, i32) {
    %c0_i32 = arith.constant 0 : i32
    %c0_i32_0 = arith.constant 0 : i32
    return %c0_i32, %arg0 : i32, i32
  }
  func.func @transform_3(%arg0: i32) -> (i32, i32) {
    %c0_i32 = arith.constant 0 : i32
    %c0_i32_0 = arith.constant 0 : i32
    return %c0_i32, %arg0 : i32, i32
  }
}

module attributes {stable_mosaic.version = 11 : i64} {
  func.func @conv_tanh_kernel(%arg0: i32, %arg1: memref<8x36xf32, #tpu.memory_space<vmem>>, %arg2: memref<8x1xf32, #tpu.memory_space<vmem>>, %arg3: memref<36x256xf32, #tpu.memory_space<vmem>>, %arg4: memref<8x256xf32, #tpu.memory_space<vmem>>) attributes {dimension_semantics = [#tpu.dimension_semantics<parallel>], iteration_bounds = array<i64: 2>, scalar_prefetch = 0 : i64, scratch_operands = 0 : i64, tpu.core_type = #tpu.core_type<tc>, window_params = [{pipeline_mode = #tpu.pipeline_mode<synchronous>, transform_indices = @transform_0, window_bounds = array<i64: 8, 36>}, {pipeline_mode = #tpu.pipeline_mode<synchronous>, transform_indices = @transform_1, window_bounds = array<i64: 8, 1>}, {transform_indices = @transform_2, window_bounds = array<i64: 36, 256>}, {transform_indices = @transform_3, window_bounds = array<i64: 8, 256>}]} {
    %c0 = arith.constant 0 : index
    %c0_0 = arith.constant 0 : index
    %0 = vector.load %arg1[%c0, %c0_0] : memref<8x36xf32, #tpu.memory_space<vmem>>, vector<8x36xf32>
    %c0_1 = arith.constant 0 : index
    %c0_2 = arith.constant 0 : index
    %1 = vector.load %arg3[%c0_1, %c0_2] : memref<36x256xf32, #tpu.memory_space<vmem>>, vector<36x256xf32>
    %cst = arith.constant dense<0.000000e+00> : vector<8x256xf32>
    %2 = tpu.matmul %0, %1, %cst {dimension_numbers = #tpu.dot_dimension_numbers<[1], [0], [0], [1], [0, 0, 1, 1], [], []>} : vector<8x36xf32>, vector<36x256xf32>, vector<8x256xf32> -> vector<8x256xf32>
    %c0_3 = arith.constant 0 : index
    %c0_4 = arith.constant 0 : index
    %3 = vector.load %arg2[%c0_3, %c0_4] : memref<8x1xf32, #tpu.memory_space<vmem>>, vector<8x1xf32>
    %4 = vector.broadcast %3 : vector<8x1xf32> to vector<8x256xf32>
    %5 = arith.addf %2, %4 : vector<8x256xf32>
    %6 = math.tanh %5 : vector<8x256xf32>
    %c0_5 = arith.constant 0 : index
    %c0_6 = arith.constant 0 : index
    %7 = vector.load %arg4[%c0_5, %c0_6] : memref<8x256xf32, #tpu.memory_space<vmem>>, vector<8x256xf32>
    tpu.vector_store %arg4[%c0_5, %c0_6], %6 {strides = array<i32>} : memref<8x256xf32, #tpu.memory_space<vmem>>, vector<8x256xf32>,
    return
  }
  func.func @transform_0(%arg0: i32) -> (i32, i32) {
    %c0_i32 = arith.constant 0 : i32
    %c0_i32_0 = arith.constant 0 : i32
    %c0_i32_1 = arith.constant 0 : i32
    return %c0_i32, %c0_i32_0 : i32, i32
  }
  func.func @transform_1(%arg0: i32) -> (i32, i32) {
    %c0_i32 = arith.constant 0 : i32
    %c0_i32_0 = arith.constant 0 : i32
    %c0_i32_1 = arith.constant 0 : i32
    return %c0_i32, %c0_i32_0 : i32, i32
  }
  func.func @transform_2(%arg0: i32) -> (i32, i32) {
    %c0_i32 = arith.constant 0 : i32
    %c0_i32_0 = arith.constant 0 : i32
    return %c0_i32, %arg0 : i32, i32
  }
  func.func @transform_3(%arg0: i32) -> (i32, i32) {
    %c0_i32 = arith.constant 0 : i32
    %c0_i32_0 = arith.constant 0 : i32
    return %c0_i32, %arg0 : i32, i32
  }
}

module attributes {stable_mosaic.version = 11 : i64} {
  func.func @conv_attn_kernel(%arg0: i32, %arg1: memref<32x72xf32, #tpu.memory_space<vmem>>, %arg2: memref<72x256xf32, #tpu.memory_space<vmem>>, %arg3: memref<4x256xf32, #tpu.memory_space<vmem>>) attributes {dimension_semantics = [#tpu.dimension_semantics<parallel>], iteration_bounds = array<i64: 2>, scalar_prefetch = 0 : i64, scratch_operands = 0 : i64, tpu.core_type = #tpu.core_type<tc>, window_params = [{pipeline_mode = #tpu.pipeline_mode<synchronous>, transform_indices = @transform_0, window_bounds = array<i64: 32, 72>}, {transform_indices = @transform_1, window_bounds = array<i64: 72, 256>}, {transform_indices = @transform_2, window_bounds = array<i64: 4, 256>}]} {
    %c0 = arith.constant 0 : index
    %c0_0 = arith.constant 0 : index
    %0 = vector.load %arg1[%c0, %c0_0] : memref<32x72xf32, #tpu.memory_space<vmem>>, vector<32x72xf32>
    %c0_1 = arith.constant 0 : index
    %c0_2 = arith.constant 0 : index
    %1 = vector.load %arg2[%c0_1, %c0_2] : memref<72x256xf32, #tpu.memory_space<vmem>>, vector<72x256xf32>
    %cst = arith.constant dense<0.000000e+00> : vector<32x256xf32>
    %2 = tpu.matmul %0, %1, %cst {dimension_numbers = #tpu.dot_dimension_numbers<[1], [0], [0], [1], [0, 0, 1, 1], [], []>} : vector<32x72xf32>, vector<72x256xf32>, vector<32x256xf32> -> vector<32x256xf32>
    %3 = vector.extract_strided_slice %2 {offsets = [0, 0], sizes = [16, 256], strides = [1, 1]} : vector<32x256xf32> to vector<16x256xf32>
    %4 = vector.extract_strided_slice %2 {offsets = [16, 0], sizes = [16, 256], strides = [1, 1]} : vector<32x256xf32> to vector<16x256xf32>
    %5 = arith.mulf %4, %4 : vector<16x256xf32>
    %6 = vector.extract_strided_slice %5 {offsets = [0, 0], sizes = [4, 256], strides = [1, 1]} : vector<16x256xf32> to vector<4x256xf32>
    %7 = vector.extract_strided_slice %5 {offsets = [4, 0], sizes = [4, 256], strides = [1, 1]} : vector<16x256xf32> to vector<4x256xf32>
    %8 = arith.maximumf %6, %7 : vector<4x256xf32>
    %9 = vector.extract_strided_slice %5 {offsets = [8, 0], sizes = [4, 256], strides = [1, 1]} : vector<16x256xf32> to vector<4x256xf32>
    %10 = arith.maximumf %8, %9 : vector<4x256xf32>
    %11 = vector.extract_strided_slice %5 {offsets = [12, 0], sizes = [4, 256], strides = [1, 1]} : vector<16x256xf32> to vector<4x256xf32>
    %12 = arith.maximumf %10, %11 : vector<4x256xf32>
    %13 = tpu.concatenate %12, %12, %12, %12 in 0 : vector<4x256xf32>, vector<4x256xf32>, vector<4x256xf32>, vector<4x256xf32> -> vector<16x256xf32>
    %14 = arith.subf %5, %13 : vector<16x256xf32>
    %15 = math.exp %14 : vector<16x256xf32>
    %16 = arith.mulf %3, %15 : vector<16x256xf32>
    %17 = vector.extract_strided_slice %15 {offsets = [0, 0], sizes = [4, 256], strides = [1, 1]} : vector<16x256xf32> to vector<4x256xf32>
    %18 = vector.extract_strided_slice %16 {offsets = [0, 0], sizes = [4, 256], strides = [1, 1]} : vector<16x256xf32> to vector<4x256xf32>
    %19 = vector.extract_strided_slice %15 {offsets = [4, 0], sizes = [4, 256], strides = [1, 1]} : vector<16x256xf32> to vector<4x256xf32>
    %20 = arith.addf %17, %19 : vector<4x256xf32>
    %21 = vector.extract_strided_slice %16 {offsets = [4, 0], sizes = [4, 256], strides = [1, 1]} : vector<16x256xf32> to vector<4x256xf32>
    %22 = arith.addf %18, %21 : vector<4x256xf32>
    %23 = vector.extract_strided_slice %15 {offsets = [8, 0], sizes = [4, 256], strides = [1, 1]} : vector<16x256xf32> to vector<4x256xf32>
    %24 = arith.addf %20, %23 : vector<4x256xf32>
    %25 = vector.extract_strided_slice %16 {offsets = [8, 0], sizes = [4, 256], strides = [1, 1]} : vector<16x256xf32> to vector<4x256xf32>
    %26 = arith.addf %22, %25 : vector<4x256xf32>
    %27 = vector.extract_strided_slice %15 {offsets = [12, 0], sizes = [4, 256], strides = [1, 1]} : vector<16x256xf32> to vector<4x256xf32>
    %28 = arith.addf %24, %27 : vector<4x256xf32>
    %29 = vector.extract_strided_slice %16 {offsets = [12, 0], sizes = [4, 256], strides = [1, 1]} : vector<16x256xf32> to vector<4x256xf32>
    %30 = arith.addf %26, %29 : vector<4x256xf32>
    %31 = arith.divf %30, %28 : vector<4x256xf32>
    %c0_3 = arith.constant 0 : index
    %c0_4 = arith.constant 0 : index
    %32 = vector.load %arg3[%c0_3, %c0_4] : memref<4x256xf32, #tpu.memory_space<vmem>>, vector<4x256xf32>
    tpu.vector_store %arg3[%c0_3, %c0_4], %31 {strides = array<i32>} : memref<4x256xf32, #tpu.memory_space<vmem>>, vector<4x256xf32>,
    return
  }
  func.func @transform_0(%arg0: i32) -> (i32, i32) {
    %c0_i32 = arith.constant 0 : i32
    %c0_i32_0 = arith.constant 0 : i32
    %c0_i32_1 = arith.constant 0 : i32
    return %c0_i32, %c0_i32_0 : i32, i32
  }
  func.func @transform_1(%arg0: i32) -> (i32, i32) {
    %c0_i32 = arith.constant 0 : i32
    %c0_i32_0 = arith.constant 0 : i32
    return %c0_i32, %arg0 : i32, i32
  }
  func.func @transform_2(%arg0: i32) -> (i32, i32) {
    %c0_i32 = arith.constant 0 : i32
    %c0_i32_0 = arith.constant 0 : i32
    return %c0_i32, %arg0 : i32, i32
  }
}

</mosaic_0001>

<llo_original>
// kernel: edgesr_cnn_forward.3
$region0: #{edgesr_cnn_forward.3}
  #allocation0 [shape = 'u32[]', space=smem, size = 0x4, offset = 0x4, fixed_abs, tag = 'smem constant byte address 0x4 - core index']
  #allocation1 [shape = 'u32[144,128]{1,0:T(1,128)}', space=vmem, size = 0x12000, scoped, tag = 'internal scratch']
  %s0 = inlined_call_operand.vmem [shape: f32[4,25], index: 0, kind: input, shape index: {}]
  %s1 = inlined_call_operand.vmem [shape: f32[4,1], index: 1, kind: input, shape index: {}]
  %s2 = inlined_call_operand.vmem [shape: f32[25,512], index: 2, kind: input, shape index: {}]
  %s3 = inlined_call_operand.vmem [shape: f32[4,512], index: 3, kind: output, shape index: {}]
  %s4 = sld [smem:[#allocation0]]
  $region68: #{edgesr_cnn_forward.3} parent=0
    _
  %s6 = ssub.s32 1, %s4
  %s7 = scalar_select 0, %s6, %s4
  $region1: #{edgesr_cnn_forward.3} parent=0
    #allocation2 [shape = 'u8[65536]{0}', space=vmem, size = 0x10000, scoped, tag = 'input window, operand 2']
    loop: start=0, step=1, limit=4
    $region2: #{edgesr_cnn_forward.3} parent=1 // loop_pre_header
      _
    $region3: #{edgesr_cnn_forward.3} parent=1 // loop_header
      %s9 = sphi 0, %s13
      %p10 = scmp.ge.s32.totalorder %s9, 4
      %s17 = sphi 0, %s17
      %s19 = sphi 0, %s17
      %s20 = sphi 0, %s19
      %s34 = sphi 0, %s20
      %s38 = sphi 0, %s38
      %s40 = sphi 0, %s38
      %s41 = sphi 0, %s40
      %s55 = sphi 0, %s41
      %s61 = sphi 0, %s63
      %s64 = sphi 0, %s61
      %s65 = sphi 0, %s64
      %s81 = sphi 0, %s65
      %s87 = sphi 0, %s89
      %s90 = sphi 0, %s87
      %s91 = sphi 0, %s90
      %s107 = sphi 0, %s91
    $region4: #{edgesr_cnn_forward.3} parent=1 // loop_header_branch
      %12 = sbr.rel (%p10) target = $region8
    $region5: #{edgesr_cnn_forward.3} parent=1 // loop_body
      %s14 = ssub.s32 %s9, 1
      %s15 = ssub.s32 %s9, 2
      %s16 = sadd.s32 %s9, 1
      %s18 = sadd.s32 %s17, 1
      %p21 = scmp.eq.s32.totalorder %s9, 1
      %p22 = scmp.ne.s32.totalorder %s17, %s19
      %p23 = scmp.eq.s32.totalorder %s9, 0
      %p24 = por %p22, %p23
      %p25 = scmp.ne.s32.totalorder %s17, %s19
      %p26 = scmp.eq.s32.totalorder %s14, 1
      %p27 = por %p25, %p26
      %p28 = scmp.ne.s32.totalorder %s19, %s20
      %p29 = scmp.eq.s32.totalorder %s14, 0
      %p30 = por %p28, %p29
      %p31 = scmp.ne.s32.totalorder %s19, %s20
      %p32 = scmp.eq.s32.totalorder %s15, 1
      %p33 = por %p31, %p32
      %p35 = scmp.ne.s32.totalorder %s20, %s34
      %p36 = scmp.eq.s32.totalorder %s15, 0
      %p37 = por %p35, %p36
      %s39 = sadd.s32 %s38, 1
      %p42 = scmp.eq.s32.totalorder %s9, 1
      %p43 = scmp.ne.s32.totalorder %s38, %s40
      %p44 = scmp.eq.s32.totalorder %s9, 0
      %p45 = por %p43, %p44
      %p46 = scmp.ne.s32.totalorder %s38, %s40
      %p47 = scmp.eq.s32.totalorder %s14, 1
      %p48 = por %p46, %p47
      %p49 = scmp.ne.s32.totalorder %s40, %s41
      %p50 = scmp.eq.s32.totalorder %s14, 0
      %p51 = por %p49, %p50
      %p52 = scmp.ne.s32.totalorder %s40, %s41
      %p53 = scmp.eq.s32.totalorder %s15, 1
      %p54 = por %p52, %p53
      %p56 = scmp.ne.s32.totalorder %s41, %s55
      %p57 = scmp.eq.s32.totalorder %s15, 0
      %p58 = por %p56, %p57
      %s59 = ssub.s32 %s9, %s16
      %p60 = scmp.eq.s32.totalorder %s59, 0
      %s62 = sadd.s32 %s61, 1
      %s63 = scalar_select %p60, %s61, %s62
      %p66 = pneg %p60
      %p67 = scmp.eq.s32.totalorder %s9, 1
      %p68 = por %p66, %p67
      %p69 = scmp.ne.s32.totalorder %s61, %s64
      %p70 = scmp.eq.s32.totalorder %s9, 0
      %p71 = por %p69, %p70
      %p72 = scmp.ne.s32.totalorder %s61, %s64
      %p73 = scmp.eq.s32.totalorder %s14, 1
      %p74 = por %p72, %p73
      %p75 = scmp.ne.s32.totalorder %s64, %s65
      %p76 = scmp.eq.s32.totalorder %s14, 0
      %p77 = por %p75, %p76
      %p78 = scmp.ne.s32.totalorder %s64, %s65
      %p79 = scmp.eq.s32.totalorder %s15, 1
      %p80 = por %p78, %p79
      %p82 = scmp.ne.s32.totalorder %s65, %s81
      %p83 = scmp.eq.s32.totalorder %s15, 0
      %p84 = por %p82, %p83
      %s85 = ssub.s32 %s9, %s16
      %p86 = scmp.eq.s32.totalorder %s85, 0
      %s88 = sadd.s32 %s87, 1
      %s89 = scalar_select %p86, %s87, %s88
      %p92 = pneg %p86
      %p93 = scmp.eq.s32.totalorder %s9, 1
      %p94 = por %p92, %p93
      %p95 = scmp.ne.s32.totalorder %s87, %s90
      %p96 = scmp.eq.s32.totalorder %s9, 0
      %p97 = por %p95, %p96
      %p98 = scmp.ne.s32.totalorder %s87, %s90
      %p99 = scmp.eq.s32.totalorder %s14, 1
      %p100 = por %p98, %p99
      %p101 = scmp.ne.s32.totalorder %s90, %s91
      %p102 = scmp.eq.s32.totalorder %s14, 0
      %p103 = por %p101, %p102
      %p104 = scmp.ne.s32.totalorder %s90, %s91
      %p105 = scmp.eq.s32.totalorder %s15, 1
      %p106 = por %p104, %p105
      %p108 = scmp.ne.s32.totalorder %s91, %s107
      %p109 = scmp.eq.s32.totalorder %s15, 0
      %p110 = por %p108, %p109
      %p111 = scmp.le.s32.totalorder 1, %s9
      %p112 = scmp.lt.s32.totalorder %s9, 3
      %p113 = pnand %p111, %p112
      %p114 = pneg %p113
      // Predicated region
      $region9: #{edgesr_cnn_forward.3} parent=5 // pred_check
        _
      $region10: #{edgesr_cnn_forward.3} parent=5 // pred_check_branch
        %116 = sbr.rel (%p113) target = $region12
      $region11: #{edgesr_cnn_forward.3} parent=5 // pred_region
        %s117 = ssub.s32 %s9, 1
        // Predicated region
        $region13: #{edgesr_cnn_forward.3} parent=11 // pred_check
          %p118 = pneg %p30
        $region14: #{edgesr_cnn_forward.3} parent=11 // pred_check_branch
          %120 = sbr.rel (%p118) target = $region16
        $region15: #{edgesr_cnn_forward.3} parent=11 // pred_region
          _
        $region16: #{edgesr_cnn_forward.3} parent=11 // pred_fallthru
          _
        // Predicated region
        $region17: #{edgesr_cnn_forward.3} parent=11 // pred_check
          %p121 = pneg %p51
        $region18: #{edgesr_cnn_forward.3} parent=11 // pred_check_branch
          %123 = sbr.rel (%p121) target = $region20
        $region19: #{edgesr_cnn_forward.3} parent=11 // pred_region
          _
        $region20: #{edgesr_cnn_forward.3} parent=11 // pred_fallthru
          _
      $region12: #{edgesr_cnn_forward.3} parent=5 // pred_fallthru
        _
      %p124 = scmp.lt.s32.totalorder %s9, 2
      // Predicated region
      $region21: #{edgesr_cnn_forward.3} parent=5 // pred_check
        %p125 = pneg %p124
      $region22: #{edgesr_cnn_forward.3} parent=5 // pred_check_branch
        %127 = sbr.rel (%p125) target = $region24
      $region23: #{edgesr_cnn_forward.3} parent=5 // pred_region
        // Predicated region
        $region25: #{edgesr_cnn_forward.3} parent=23 // pred_check
          %p128 = pneg %p71
        $region26: #{edgesr_cnn_forward.3} parent=23 // pred_check_branch
          %130 = sbr.rel (%p128) target = $region28
        $region27: #{edgesr_cnn_forward.3} parent=23 // pred_region
          %s131 = sand.u32 %s61, 1
          %s132 = sand.u32 %s61, 1
          %s133 = smul.addr %s132, 64
          %s134 = scalar_lea.vmem [#allocation2], %s133
          %s135 = smul.u32 2, %s9
          %s136 = smul.addr %s135, 8
          %s137 = scalar_lea.vmem %s2, %s136
          // Predicated region
          $region29: #{edgesr_cnn_forward.3} parent=27 // pred_check
            _
          $region30: #{edgesr_cnn_forward.3} parent=27 // pred_check_branch
            %139 = sbr.rel (0) target = $region32
          $region31: #{edgesr_cnn_forward.3} parent=27 // pred_region
            // Predicated region
            $region33: #{edgesr_cnn_forward.3} parent=31 // pred_check
              _
            $region34: #{edgesr_cnn_forward.3} parent=31 // pred_check_branch
              %141 = sbr.rel (0) target = $region36
            $region35: #{edgesr_cnn_forward.3} parent=31 // pred_region
              loop: start=0, step=1, limit=1
              $region37: #{edgesr_cnn_forward.3} parent=35 // loop_pre_header
                _
              $region38: #{edgesr_cnn_forward.3} parent=35 // loop_header
                %s143 = sphi 0, %s147
                %p144 = scmp.ge.s32.totalorder %s143, 1
                %s148 = sphi %s137, %s137
                %s149 = sphi %s134, %s134
              $region39: #{edgesr_cnn_forward.3} parent=35 // loop_header_branch
                %146 = sbr.rel (%p144) target = $region43
              $region40: #{edgesr_cnn_forward.3} parent=35 // loop_body
                %v150 = vld [vmem:[%s148] sm:$0xff]
                %151 = vst [vmem:[%s149] sm:$0xff] %v150
                %v152 = vld [vmem:[%s148 + $0x8] sm:$0xff]
                %153 = vst [vmem:[%s149 + $0x8] sm:$0xff] %v152
                %v154 = vld [vmem:[%s148 + $0x20] sm:$0xff]
                %155 = vst [vmem:[%s149 + $0x10] sm:$0xff] %v154
                %v156 = vld [vmem:[%s148 + $0x28] sm:$0xff]
                %157 = vst [vmem:[%s149 + $0x18] sm:$0xff] %v156
                %v158 = vld [vmem:[%s148 + $0x40] sm:$0xff]
                %159 = vst [vmem:[%s149 + $0x20] sm:$0xff] %v158
                %v160 = vld [vmem:[%s148 + $0x48] sm:$0xff]
                %161 = vst [vmem:[%s149 + $0x28] sm:$0xff] %v160
                %v162 = vld [vmem:[%s148 + $0x60] sm:$0xff]
                %163 = vst [vmem:[%s149 + $0x30] sm:$0xff] %v162
                %v164 = vld [vmem:[%s148 + $0x68] sm:$0xff]
                %165 = vst [vmem:[%s149 + $0x38] sm:$0xff] %v164
              $region41: #{edgesr_cnn_forward.3} parent=35 // loop_footer
                %s147 = sadd.s32 1, %s143
              $region42: #{edgesr_cnn_forward.3} parent=35 // loop_footer_branch
                %142 = sbr.rel target = $region38
              $region43: #{edgesr_cnn_forward.3} parent=35 // loop_exit
                _
            $region36: #{edgesr_cnn_forward.3} parent=31 // pred_fallthru
              _
            // Predicated region
            $region44: #{edgesr_cnn_forward.3} parent=31 // pred_check
              _
            $region45: #{edgesr_cnn_forward.3} parent=31 // pred_check_branch
              %167 = sbr.rel target = $region47
            $region46: #{edgesr_cnn_forward.3} parent=31 // pred_region
              _
            $region47: #{edgesr_cnn_forward.3} parent=31 // pred_fallthru
              _
          $region32: #{edgesr_cnn_forward.3} parent=27 // pred_fallthru
            _
          %168 = vnop
        $region28: #{edgesr_cnn_forward.3} parent=23 // pred_fallthru
          _
      $region24: #{edgesr_cnn_forward.3} parent=5 // pred_fallthru
        _
      %p169 = scmp.le.s32.totalorder 1, %s9
      %p170 = scmp.lt.s32.totalorder %s9, 3
      %p171 = pnand %p169, %p170
      %p172 = pneg %p171
      // Predicated region
      $region48: #{edgesr_cnn_forward.3} parent=5 // pred_check
        _
      $region49: #{edgesr_cnn_forward.3} parent=5 // pred_check_branch
        %174 = sbr.rel (%p171) target = $region51
      $region50: #{edgesr_cnn_forward.3} parent=5 // pred_region
        %s175 = ssub.s32 %s9, 1
        %s176 = sand.u32 %s64, 1
        %s177 = sand.u32 %s64, 1
        %s178 = smul.addr %s177, 64
        %s179 = scalar_lea.vmem [#allocation2], %s178
        // Predicated region
        $region52: #{edgesr_cnn_forward.3} parent=50 // pred_check
          %p180 = pneg %p77
        $region53: #{edgesr_cnn_forward.3} parent=50 // pred_check_branch
          %182 = sbr.rel (%p180) target = $region55
        $region54: #{edgesr_cnn_forward.3} parent=50 // pred_region
          _
        $region55: #{edgesr_cnn_forward.3} parent=50 // pred_fallthru
          _
        %p183 = pneg %p30
        %p184 = pneg %p27
        %p185 = pneg %p51
        %p186 = pneg %p48
        %s187 = sand.u32 %s64, 1
        %s188 = sand.u32 %s64, 1
        %s189 = smul.addr %s188, 64
        %s190 = scalar_lea.vmem [#allocation2], %s189
        %p191 = pneg %p77
        %p192 = pneg %p74
        %p193 = pneg %p103
        %p194 = pneg %p100
        %s195 = smul.u32 2, %s14
        %p196 = scmp.lt.s32.totalorder %s195, 3
        %s197 = scalar_select %p196, %s195, 3
        %s198 = smul.addr %s197, 4
        %s199 = scalar_lea.vmem %s3, %s198
        %s200 = smul.u32 2, %s14
        %s201 = smul.u32 2, %s14
        %p202 = scmp.lt.s32.totalorder %s201, 3
        %s203 = scalar_select %p202, %s201, 3
        %s204 = smul.addr %s203, 4
        %s205 = scalar_lea.vmem %s3, %s204
        %s206 = smul.u32 2, %s14
        %v207 = vld [vmem:[%s0] sm:$0xf]
        %v208 = vld [vmem:[%s179] sm:$0xff]
        %v209 = vld [vmem:[%s179 + $0x8] sm:$0xff]
        %v210 = vld [vmem:[%s179 + $0x10] sm:$0xff]
        %v211 = vld [vmem:[%s179 + $0x18] sm:$0xff]
        %v212 = vld [vmem:[%s179 + $0x20] sm:$0xff]
        %v213 = vld [vmem:[%s179 + $0x28] sm:$0xff]
        %v214 = vld [vmem:[%s179 + $0x30] sm:$0x1]
        %v215 = vld [vmem:[%s179 + $0x38] sm:$0x1]
        %v216 = vld [vmem:[%s1] sm:$0xf]
        %218 = vset.pattern.permute.xlu0 0
        %219 = vperm.xlu0 %218, %v216
        %v220 = vpop.permute.xlu0 %219
        %vm222 = vcmask 203776
        %v224 = vsel %vm222, %v207, 0
        %vm226 = vcmask 1040384
        %v228 = vsel %vm226, %v214, 0
        %v231 = vsel %vm226, %v215, 0
        %233 = vmatprep.subr.mxu0 0.0
        %234 = vmatpush1.msra.mxu0 0.0
        %235 = vmatprep.subr.mxu0 0.0
        %236 = vmatpush1.msra.mxu0 0.0
        %237 = vmatprep.subr.mxu0 0.0
        %238 = vmatpush1.msra.mxu0 0.0
        %239 = vmatprep.subr.mxu0 0.0
        %240 = vmatpush1.msra.mxu0 0.0
        %241 = vmatprep.subr.mxu0 0.0
        %242 = vmatpush1.msra.mxu0 0.0
        %243 = vmatprep.subr.mxu0 0.0
        %244 = vmatpush1.msra.mxu0 0.0
        %245 = vmatprep.subr.mxu0 0.0
        %246 = vmatpush1.msra.mxu0 0.0
        %247 = vmatprep.subr.mxu0 0.0
        %248 = vmatpush1.msra.mxu0 0.0
        %249 = vmatprep.subr.mxu0 0.0
        %250 = vmatpush1.msra.mxu0 0.0
        %251 = vmatprep.subr.mxu0 0.0
        %252 = vmatpush1.msra.mxu0 0.0
        %253 = vmatprep.subr.mxu0 0.0
        %254 = vmatpush1.msra.mxu0 0.0
        %255 = vmatprep.subr.mxu0 0.0
        %256 = vmatpush1.msra.mxu0 0.0
        %257 = vmatprep.subr.mxu0 %v231
        %258 = vmatpush1.msra.mxu0 %v228
        %259 = vmatprep.subr.mxu0 %v213
        %260 = vmatpush1.msra.mxu0 %v212
        %261 = vmatprep.subr.mxu0 %v211
        %262 = vmatpush1.msra.mxu0 %v210
        %263 = vmatprep.subr.mxu0 %v209
        %264 = vmatpush1.msra.mxu0 %v208
        %265 = vmatprep.subr.mxu0 0.0
        %266 = vmatpush2.msra.mxu0 0.0
        %267 = vmatprep.subr.mxu0 0.0
        %268 = vmatpush2.msra.mxu0 0.0
        %269 = vmatprep.subr.mxu0 0.0
        %270 = vmatpush2.msra.mxu0 0.0
        %271 = vmatprep.subr.mxu0 0.0
        %272 = vmatpush2.msra.mxu0 0.0
        %273 = vmatprep.subr.mxu0 0.0
        %274 = vmatpush2.msra.mxu0 0.0
        %275 = vmatprep.subr.mxu0 0.0
        %276 = vmatpush2.msra.mxu0 0.0
        %277 = vmatprep.subr.mxu0 0.0
        %278 = vmatpush2.msra.mxu0 0.0
        %279 = vmatprep.subr.mxu0 0.0
        %280 = vmatpush2.msra.mxu0 0.0
        %281 = vmatprep.subr.mxu0 0.0
        %282 = vmatpush2.msra.mxu0 0.0
        %283 = vmatprep.subr.mxu0 0.0
        %284 = vmatpush2.msra.mxu0 0.0
        %285 = vmatprep.subr.mxu0 0.0
        %286 = vmatpush2.msra.mxu0 0.0
        %287 = vmatprep.subr.mxu0 0.0
        %288 = vmatpush2.msra.mxu0 0.0
        %289 = vmatprep.subr.mxu0 0.0
        %290 = vmatpush2.msra.mxu0 0.0
        %291 = vmatprep.subr.mxu0 0.0
        %292 = vmatpush2.msra.mxu0 0.0
        %293 = vmatprep.subr.mxu0 0.0
        %294 = vmatpush2.msra.mxu0 0.0
        %295 = vmatprep.subr.mxu0 0.0
        %296 = vmatpush2.msra.mxu0 0.0
        %297 = vmatprep.mubr.f32.mxu0 0.0
        %298 = vmatmul.mubr.f32.gmra.mxu0 %v224
        %v299 = vpop.f32.mrf.mxu0
        %v300 = vadd.f32 %v220, %v299
        %v301 = vpop.f32.mrf.mxu0
        %v302 = vadd.f32 %v220, %v301
        %303 = vdwg.mxu0
        %v304 = vtanh.pop %v300
        %v305 = vtanh.pop %v302
        %v308 = vcombine.low %v304, %v305
        %310 = vst [vmem:[%s205] sm:$0xff] %v308
        %s311 = smul.u32 2, %s14
        %p312 = scmp.lt.s32.totalorder %s311, 3
        %s313 = scalar_select %p312, %s311, 3
        %s314 = smul.addr %s313, 4
        %s315 = scalar_lea.vmem %s3, %s314
        // Predicated region
        $region56: #{edgesr_cnn_forward.3} parent=50 // pred_check
          %p316 = pneg %p100
        $region57: #{edgesr_cnn_forward.3} parent=50 // pred_check_branch
          %318 = sbr.rel (%p316) target = $region59
        $region58: #{edgesr_cnn_forward.3} parent=50 // pred_region
          %s319 = smul.u32 2, %s14
        $region59: #{edgesr_cnn_forward.3} parent=50 // pred_fallthru
          _
      $region51: #{edgesr_cnn_forward.3} parent=5 // pred_fallthru
        _
      %p320 = scmp.le.s32.totalorder 2, %s9
      // Predicated region
      $region60: #{edgesr_cnn_forward.3} parent=5 // pred_check
        %p321 = pneg %p320
      $region61: #{edgesr_cnn_forward.3} parent=5 // pred_check_branch
        %323 = sbr.rel (%p321) target = $region63
      $region62: #{edgesr_cnn_forward.3} parent=5 // pred_region
        %s324 = ssub.s32 %s9, 2
        // Predicated region
        $region64: #{edgesr_cnn_forward.3} parent=62 // pred_check
          %p325 = pneg %p106
        $region65: #{edgesr_cnn_forward.3} parent=62 // pred_check_branch
          %327 = sbr.rel (%p325) target = $region67
        $region66: #{edgesr_cnn_forward.3} parent=62 // pred_region
          %s328 = smul.u32 2, %s15
          %p329 = scmp.lt.s32.totalorder %s328, 3
          %s330 = scalar_select %p329, %s328, 3
          %s331 = smul.addr %s330, 4
          %s332 = scalar_lea.vmem %s3, %s331
        $region67: #{edgesr_cnn_forward.3} parent=62 // pred_fallthru
          _
      $region63: #{edgesr_cnn_forward.3} parent=5 // pred_fallthru
        _
    $region6: #{edgesr_cnn_forward.3} parent=1 // loop_footer
      %s13 = sadd.s32 1, %s9
    $region7: #{edgesr_cnn_forward.3} parent=1 // loop_footer_branch
      %8 = sbr.rel target = $region3
    $region8: #{edgesr_cnn_forward.3} parent=1 // loop_exit
      _

// kernel: edgesr_cnn_forward.4
$region0: #{edgesr_cnn_forward.4}
  #allocation0 [shape = 'u32[]', space=smem, size = 0x4, offset = 0x4, fixed_abs, tag = 'smem constant byte address 0x4 - core index']
  #allocation1 [shape = 'u32[144,128]{1,0:T(1,128)}', space=vmem, size = 0x12000, scoped, tag = 'internal scratch']
  %s0 = inlined_call_operand.vmem [shape: f32[8,36], index: 0, kind: input, shape index: {}]
  %s1 = inlined_call_operand.vmem [shape: f32[8,1], index: 1, kind: input, shape index: {}]
  %s2 = inlined_call_operand.vmem [shape: f32[36,512], index: 2, kind: input, shape index: {}]
  %s3 = inlined_call_operand.vmem [shape: f32[8,512], index: 3, kind: output, shape index: {}]
  %s4 = sld [smem:[#allocation0]]
  $region68: #{edgesr_cnn_forward.4} parent=0
    _
  %s6 = ssub.s32 1, %s4
  %s7 = scalar_select 0, %s6, %s4
  $region1: #{edgesr_cnn_forward.4} parent=0
    #allocation2 [shape = 'u8[81920]{0}', space=vmem, size = 0x14000, scoped, tag = 'input window, operand 2']
    loop: start=0, step=1, limit=4
    $region2: #{edgesr_cnn_forward.4} parent=1 // loop_pre_header
      _
    $region3: #{edgesr_cnn_forward.4} parent=1 // loop_header
      %s9 = sphi 0, %s13
      %p10 = scmp.ge.s32.totalorder %s9, 4
      %s17 = sphi 0, %s17
      %s19 = sphi 0, %s17
      %s20 = sphi 0, %s19
      %s34 = sphi 0, %s20
      %s38 = sphi 0, %s38
      %s40 = sphi 0, %s38
      %s41 = sphi 0, %s40
      %s55 = sphi 0, %s41
      %s61 = sphi 0, %s63
      %s64 = sphi 0, %s61
      %s65 = sphi 0, %s64
      %s81 = sphi 0, %s65
      %s87 = sphi 0, %s89
      %s90 = sphi 0, %s87
      %s91 = sphi 0, %s90
      %s107 = sphi 0, %s91
    $region4: #{edgesr_cnn_forward.4} parent=1 // loop_header_branch
      %12 = sbr.rel (%p10) target = $region8
    $region5: #{edgesr_cnn_forward.4} parent=1 // loop_body
      %s14 = ssub.s32 %s9, 1
      %s15 = ssub.s32 %s9, 2
      %s16 = sadd.s32 %s9, 1
      %s18 = sadd.s32 %s17, 1
      %p21 = scmp.eq.s32.totalorder %s9, 1
      %p22 = scmp.ne.s32.totalorder %s17, %s19
      %p23 = scmp.eq.s32.totalorder %s9, 0
      %p24 = por %p22, %p23
      %p25 = scmp.ne.s32.totalorder %s17, %s19
      %p26 = scmp.eq.s32.totalorder %s14, 1
      %p27 = por %p25, %p26
      %p28 = scmp.ne.s32.totalorder %s19, %s20
      %p29 = scmp.eq.s32.totalorder %s14, 0
      %p30 = por %p28, %p29
      %p31 = scmp.ne.s32.totalorder %s19, %s20
      %p32 = scmp.eq.s32.totalorder %s15, 1
      %p33 = por %p31, %p32
      %p35 = scmp.ne.s32.totalorder %s20, %s34
      %p36 = scmp.eq.s32.totalorder %s15, 0
      %p37 = por %p35, %p36
      %s39 = sadd.s32 %s38, 1
      %p42 = scmp.eq.s32.totalorder %s9, 1
      %p43 = scmp.ne.s32.totalorder %s38, %s40
      %p44 = scmp.eq.s32.totalorder %s9, 0
      %p45 = por %p43, %p44
      %p46 = scmp.ne.s32.totalorder %s38, %s40
      %p47 = scmp.eq.s32.totalorder %s14, 1
      %p48 = por %p46, %p47
      %p49 = scmp.ne.s32.totalorder %s40, %s41
      %p50 = scmp.eq.s32.totalorder %s14, 0
      %p51 = por %p49, %p50
      %p52 = scmp.ne.s32.totalorder %s40, %s41
      %p53 = scmp.eq.s32.totalorder %s15, 1
      %p54 = por %p52, %p53
      %p56 = scmp.ne.s32.totalorder %s41, %s55
      %p57 = scmp.eq.s32.totalorder %s15, 0
      %p58 = por %p56, %p57
      %s59 = ssub.s32 %s9, %s16
      %p60 = scmp.eq.s32.totalorder %s59, 0
      %s62 = sadd.s32 %s61, 1
      %s63 = scalar_select %p60, %s61, %s62
      %p66 = pneg %p60
      %p67 = scmp.eq.s32.totalorder %s9, 1
      %p68 = por %p66, %p67
      %p69 = scmp.ne.s32.totalorder %s61, %s64
      %p70 = scmp.eq.s32.totalorder %s9, 0
      %p71 = por %p69, %p70
      %p72 = scmp.ne.s32.totalorder %s61, %s64
      %p73 = scmp.eq.s32.totalorder %s14, 1
      %p74 = por %p72, %p73
      %p75 = scmp.ne.s32.totalorder %s64, %s65
      %p76 = scmp.eq.s32.totalorder %s14, 0
      %p77 = por %p75, %p76
      %p78 = scmp.ne.s32.totalorder %s64, %s65
      %p79 = scmp.eq.s32.totalorder %s15, 1
      %p80 = por %p78, %p79
      %p82 = scmp.ne.s32.totalorder %s65, %s81
      %p83 = scmp.eq.s32.totalorder %s15, 0
      %p84 = por %p82, %p83
      %s85 = ssub.s32 %s9, %s16
      %p86 = scmp.eq.s32.totalorder %s85, 0
      %s88 = sadd.s32 %s87, 1
      %s89 = scalar_select %p86, %s87, %s88
      %p92 = pneg %p86
      %p93 = scmp.eq.s32.totalorder %s9, 1
      %p94 = por %p92, %p93
      %p95 = scmp.ne.s32.totalorder %s87, %s90
      %p96 = scmp.eq.s32.totalorder %s9, 0
      %p97 = por %p95, %p96
      %p98 = scmp.ne.s32.totalorder %s87, %s90
      %p99 = scmp.eq.s32.totalorder %s14, 1
      %p100 = por %p98, %p99
      %p101 = scmp.ne.s32.totalorder %s90, %s91
      %p102 = scmp.eq.s32.totalorder %s14, 0
      %p103 = por %p101, %p102
      %p104 = scmp.ne.s32.totalorder %s90, %s91
      %p105 = scmp.eq.s32.totalorder %s15, 1
      %p106 = por %p104, %p105
      %p108 = scmp.ne.s32.totalorder %s91, %s107
      %p109 = scmp.eq.s32.totalorder %s15, 0
      %p110 = por %p108, %p109
      %p111 = scmp.le.s32.totalorder 1, %s9
      %p112 = scmp.lt.s32.totalorder %s9, 3
      %p113 = pnand %p111, %p112
      %p114 = pneg %p113
      // Predicated region
      $region9: #{edgesr_cnn_forward.4} parent=5 // pred_check
        _
      $region10: #{edgesr_cnn_forward.4} parent=5 // pred_check_branch
        %116 = sbr.rel (%p113) target = $region12
      $region11: #{edgesr_cnn_forward.4} parent=5 // pred_region
        %s117 = ssub.s32 %s9, 1
        // Predicated region
        $region13: #{edgesr_cnn_forward.4} parent=11 // pred_check
          %p118 = pneg %p30
        $region14: #{edgesr_cnn_forward.4} parent=11 // pred_check_branch
          %120 = sbr.rel (%p118) target = $region16
        $region15: #{edgesr_cnn_forward.4} parent=11 // pred_region
          _
        $region16: #{edgesr_cnn_forward.4} parent=11 // pred_fallthru
          _
        // Predicated region
        $region17: #{edgesr_cnn_forward.4} parent=11 // pred_check
          %p121 = pneg %p51
        $region18: #{edgesr_cnn_forward.4} parent=11 // pred_check_branch
          %123 = sbr.rel (%p121) target = $region20
        $region19: #{edgesr_cnn_forward.4} parent=11 // pred_region
          _
        $region20: #{edgesr_cnn_forward.4} parent=11 // pred_fallthru
          _
      $region12: #{edgesr_cnn_forward.4} parent=5 // pred_fallthru
        _
      %p124 = scmp.lt.s32.totalorder %s9, 2
      // Predicated region
      $region21: #{edgesr_cnn_forward.4} parent=5 // pred_check
        %p125 = pneg %p124
      $region22: #{edgesr_cnn_forward.4} parent=5 // pred_check_branch
        %127 = sbr.rel (%p125) target = $region24
      $region23: #{edgesr_cnn_forward.4} parent=5 // pred_region
        // Predicated region
        $region25: #{edgesr_cnn_forward.4} parent=23 // pred_check
          %p128 = pneg %p71
        $region26: #{edgesr_cnn_forward.4} parent=23 // pred_check_branch
          %130 = sbr.rel (%p128) target = $region28
        $region27: #{edgesr_cnn_forward.4} parent=23 // pred_region
          %s131 = sand.u32 %s61, 1
          %s132 = sand.u32 %s61, 1
          %s133 = smul.addr %s132, 80
          %s134 = scalar_lea.vmem [#allocation2], %s133
          %s135 = smul.u32 2, %s9
          %s136 = smul.addr %s135, 8
          %s137 = scalar_lea.vmem %s2, %s136
          // Predicated region
          $region29: #{edgesr_cnn_forward.4} parent=27 // pred_check
            _
          $region30: #{edgesr_cnn_forward.4} parent=27 // pred_check_branch
            %139 = sbr.rel (0) target = $region32
          $region31: #{edgesr_cnn_forward.4} parent=27 // pred_region
            // Predicated region
            $region33: #{edgesr_cnn_forward.4} parent=31 // pred_check
              _
            $region34: #{edgesr_cnn_forward.4} parent=31 // pred_check_branch
              %141 = sbr.rel (0) target = $region36
            $region35: #{edgesr_cnn_forward.4} parent=31 // pred_region
              loop: start=0, step=1, limit=1
              $region37: #{edgesr_cnn_forward.4} parent=35 // loop_pre_header
                _
              $region38: #{edgesr_cnn_forward.4} parent=35 // loop_header
                %s143 = sphi 0, %s147
                %p144 = scmp.ge.s32.totalorder %s143, 1
                %s148 = sphi %s137, %s137
                %s149 = sphi %s134, %s134
              $region39: #{edgesr_cnn_forward.4} parent=35 // loop_header_branch
                %146 = sbr.rel (%p144) target = $region43
              $region40: #{edgesr_cnn_forward.4} parent=35 // loop_body
                %v150 = vld [vmem:[%s148] sm:$0xff]
                %151 = vst [vmem:[%s149] sm:$0xff] %v150
                %v152 = vld [vmem:[%s148 + $0x8] sm:$0xff]
                %153 = vst [vmem:[%s149 + $0x8] sm:$0xff] %v152
                %v154 = vld [vmem:[%s148 + $0x20] sm:$0xff]
                %155 = vst [vmem:[%s149 + $0x10] sm:$0xff] %v154
                %v156 = vld [vmem:[%s148 + $0x28] sm:$0xff]
                %157 = vst [vmem:[%s149 + $0x18] sm:$0xff] %v156
                %v158 = vld [vmem:[%s148 + $0x40] sm:$0xff]
                %159 = vst [vmem:[%s149 + $0x20] sm:$0xff] %v158
                %v160 = vld [vmem:[%s148 + $0x48] sm:$0xff]
                %161 = vst [vmem:[%s149 + $0x28] sm:$0xff] %v160
                %v162 = vld [vmem:[%s148 + $0x60] sm:$0xff]
                %163 = vst [vmem:[%s149 + $0x30] sm:$0xff] %v162
                %v164 = vld [vmem:[%s148 + $0x68] sm:$0xff]
                %165 = vst [vmem:[%s149 + $0x38] sm:$0xff] %v164
                %v166 = vld [vmem:[%s148 + $0x80] sm:$0xff]
                %167 = vst [vmem:[%s149 + $0x40] sm:$0xff] %v166
                %v168 = vld [vmem:[%s148 + $0x88] sm:$0xff]
                %169 = vst [vmem:[%s149 + $0x48] sm:$0xff] %v168
              $region41: #{edgesr_cnn_forward.4} parent=35 // loop_footer
                %s147 = sadd.s32 1, %s143
              $region42: #{edgesr_cnn_forward.4} parent=35 // loop_footer_branch
                %142 = sbr.rel target = $region38
              $region43: #{edgesr_cnn_forward.4} parent=35 // loop_exit
                _
            $region36: #{edgesr_cnn_forward.4} parent=31 // pred_fallthru
              _
            // Predicated region
            $region44: #{edgesr_cnn_forward.4} parent=31 // pred_check
              _
            $region45: #{edgesr_cnn_forward.4} parent=31 // pred_check_branch
              %171 = sbr.rel target = $region47
            $region46: #{edgesr_cnn_forward.4} parent=31 // pred_region
              _
            $region47: #{edgesr_cnn_forward.4} parent=31 // pred_fallthru
              _
          $region32: #{edgesr_cnn_forward.4} parent=27 // pred_fallthru
            _
          %172 = vnop
        $region28: #{edgesr_cnn_forward.4} parent=23 // pred_fallthru
          _
      $region24: #{edgesr_cnn_forward.4} parent=5 // pred_fallthru
        _
      %p173 = scmp.le.s32.totalorder 1, %s9
      %p174 = scmp.lt.s32.totalorder %s9, 3
      %p175 = pnand %p173, %p174
      %p176 = pneg %p175
      // Predicated region
      $region48: #{edgesr_cnn_forward.4} parent=5 // pred_check
        _
      $region49: #{edgesr_cnn_forward.4} parent=5 // pred_check_branch
        %178 = sbr.rel (%p175) target = $region51
      $region50: #{edgesr_cnn_forward.4} parent=5 // pred_region
        %s179 = ssub.s32 %s9, 1
        %s180 = sand.u32 %s64, 1
        %s181 = sand.u32 %s64, 1
        %s182 = smul.addr %s181, 80
        %s183 = scalar_lea.vmem [#allocation2], %s182
        // Predicated region
        $region52: #{edgesr_cnn_forward.4} parent=50 // pred_check
          %p184 = pneg %p77
        $region53: #{edgesr_cnn_forward.4} parent=50 // pred_check_branch
          %186 = sbr.rel (%p184) target = $region55
        $region54: #{edgesr_cnn_forward.4} parent=50 // pred_region
          _
        $region55: #{edgesr_cnn_forward.4} parent=50 // pred_fallthru
          _
        %p187 = pneg %p30
        %p188 = pneg %p27
        %p189 = pneg %p51
        %p190 = pneg %p48
        %s191 = sand.u32 %s64, 1
        %s192 = sand.u32 %s64, 1
        %s193 = smul.addr %s192, 80
        %s194 = scalar_lea.vmem [#allocation2], %s193
        %p195 = pneg %p77
        %p196 = pneg %p74
        %p197 = pneg %p103
        %p198 = pneg %p100
        %s199 = smul.u32 2, %s14
        %p200 = scmp.lt.s32.totalorder %s199, 3
        %s201 = scalar_select %p200, %s199, 3
        %s202 = smul.addr %s201, 8
        %s203 = scalar_lea.vmem %s3, %s202
        %s204 = smul.u32 2, %s14
        %s205 = smul.u32 2, %s14
        %p206 = scmp.lt.s32.totalorder %s205, 3
        %s207 = scalar_select %p206, %s205, 3
        %s208 = smul.addr %s207, 8
        %s209 = scalar_lea.vmem %s3, %s208
        %s210 = smul.u32 2, %s14
        %v211 = vld [vmem:[%s0] sm:$0xff]
        %v212 = vld [vmem:[%s183] sm:$0xff]
        %v213 = vld [vmem:[%s183 + $0x8] sm:$0xff]
        %v214 = vld [vmem:[%s183 + $0x10] sm:$0xff]
        %v215 = vld [vmem:[%s183 + $0x18] sm:$0xff]
        %v216 = vld [vmem:[%s183 + $0x20] sm:$0xff]
        %v217 = vld [vmem:[%s183 + $0x28] sm:$0xff]
        %v218 = vld [vmem:[%s183 + $0x30] sm:$0xff]
        %v219 = vld [vmem:[%s183 + $0x38] sm:$0xff]
        %v220 = vld [vmem:[%s183 + $0x40] sm:$0xf]
        %v221 = vld [vmem:[%s183 + $0x48] sm:$0xf]
        %v222 = vld [vmem:[%s1] sm:$0xff]
        %224 = vset.pattern.permute.xlu0 0
        %225 = vperm.xlu0 %224, %v222
        %v226 = vpop.permute.xlu0 %225
        %vm228 = vcmask 293888
        %v230 = vsel %vm228, %v211, 0
        %vm232 = vcmask 1043456
        %v234 = vsel %vm232, %v220, 0
        %v237 = vsel %vm232, %v221, 0
        %239 = vmatprep.subr.mxu0 0.0
        %240 = vmatpush1.msra.mxu0 0.0
        %241 = vmatprep.subr.mxu0 0.0
        %242 = vmatpush1.msra.mxu0 0.0
        %243 = vmatprep.subr.mxu0 0.0
        %244 = vmatpush1.msra.mxu0 0.0
        %245 = vmatprep.subr.mxu0 0.0
        %246 = vmatpush1.msra.mxu0 0.0
        %247 = vmatprep.subr.mxu0 0.0
        %248 = vmatpush1.msra.mxu0 0.0
        %249 = vmatprep.subr.mxu0 0.0
        %250 = vmatpush1.msra.mxu0 0.0
        %251 = vmatprep.subr.mxu0 0.0
        %252 = vmatpush1.msra.mxu0 0.0
        %253 = vmatprep.subr.mxu0 0.0
        %254 = vmatpush1.msra.mxu0 0.0
        %255 = vmatprep.subr.mxu0 0.0
        %256 = vmatpush1.msra.mxu0 0.0
        %257 = vmatprep.subr.mxu0 0.0
        %258 = vmatpush1.msra.mxu0 0.0
        %259 = vmatprep.subr.mxu0 0.0
        %260 = vmatpush1.msra.mxu0 0.0
        %261 = vmatprep.subr.mxu0 %v237
        %262 = vmatpush1.msra.mxu0 %v234
        %263 = vmatprep.subr.mxu0 %v219
        %264 = vmatpush1.msra.mxu0 %v218
        %265 = vmatprep.subr.mxu0 %v217
        %266 = vmatpush1.msra.mxu0 %v216
        %267 = vmatprep.subr.mxu0 %v215
        %268 = vmatpush1.msra.mxu0 %v214
        %269 = vmatprep.subr.mxu0 %v213
        %270 = vmatpush1.msra.mxu0 %v212
        %271 = vmatprep.subr.mxu0 0.0
        %272 = vmatpush2.msra.mxu0 0.0
        %273 = vmatprep.subr.mxu0 0.0
        %274 = vmatpush2.msra.mxu0 0.0
        %275 = vmatprep.subr.mxu0 0.0
        %276 = vmatpush2.msra.mxu0 0.0
        %277 = vmatprep.subr.mxu0 0.0
        %278 = vmatpush2.msra.mxu0 0.0
        %279 = vmatprep.subr.mxu0 0.0
        %280 = vmatpush2.msra.mxu0 0.0
        %281 = vmatprep.subr.mxu0 0.0
        %282 = vmatpush2.msra.mxu0 0.0
        %283 = vmatprep.subr.mxu0 0.0
        %284 = vmatpush2.msra.mxu0 0.0
        %285 = vmatprep.subr.mxu0 0.0
        %286 = vmatpush2.msra.mxu0 0.0
        %287 = vmatprep.subr.mxu0 0.0
        %288 = vmatpush2.msra.mxu0 0.0
        %289 = vmatprep.subr.mxu0 0.0
        %290 = vmatpush2.msra.mxu0 0.0
        %291 = vmatprep.subr.mxu0 0.0
        %292 = vmatpush2.msra.mxu0 0.0
        %293 = vmatprep.subr.mxu0 0.0
        %294 = vmatpush2.msra.mxu0 0.0
        %295 = vmatprep.subr.mxu0 0.0
        %296 = vmatpush2.msra.mxu0 0.0
        %297 = vmatprep.subr.mxu0 0.0
        %298 = vmatpush2.msra.mxu0 0.0
        %299 = vmatprep.subr.mxu0 0.0
        %300 = vmatpush2.msra.mxu0 0.0
        %301 = vmatprep.subr.mxu0 0.0
        %302 = vmatpush2.msra.mxu0 0.0
        %303 = vmatprep.mubr.f32.mxu0 0.0
        %304 = vmatmul.mubr.f32.gmra.mxu0 %v230
        %v305 = vpop.f32.mrf.mxu0
        %v306 = vadd.f32 %v226, %v305
        %v307 = vpop.f32.mrf.mxu0
        %v308 = vadd.f32 %v226, %v307
        %309 = vdwg.mxu0
        %v310 = vtanh.pop %v306
        %v311 = vtanh.pop %v308
        %312 = vst [vmem:[%s209] sm:$0xff] %v310
        %313 = vst [vmem:[%s209 + $0x8] sm:$0xff] %v311
        %s314 = smul.u32 2, %s14
        %p315 = scmp.lt.s32.totalorder %s314, 3
        %s316 = scalar_select %p315, %s314, 3
        %s317 = smul.addr %s316, 8
        %s318 = scalar_lea.vmem %s3, %s317
        // Predicated region
        $region56: #{edgesr_cnn_forward.4} parent=50 // pred_check
          %p319 = pneg %p100
        $region57: #{edgesr_cnn_forward.4} parent=50 // pred_check_branch
          %321 = sbr.rel (%p319) target = $region59
        $region58: #{edgesr_cnn_forward.4} parent=50 // pred_region
          %s322 = smul.u32 2, %s14
        $region59: #{edgesr_cnn_forward.4} parent=50 // pred_fallthru
          _
      $region51: #{edgesr_cnn_forward.4} parent=5 // pred_fallthru
        _
      %p323 = scmp.le.s32.totalorder 2, %s9
      // Predicated region
      $region60: #{edgesr_cnn_forward.4} parent=5 // pred_check
        %p324 = pneg %p323
      $region61: #{edgesr_cnn_forward.4} parent=5 // pred_check_branch
        %326 = sbr.rel (%p324) target = $region63
      $region62: #{edgesr_cnn_forward.4} parent=5 // pred_region
        %s327 = ssub.s32 %s9, 2
        // Predicated region
        $region64: #{edgesr_cnn_forward.4} parent=62 // pred_check
          %p328 = pneg %p106
        $region65: #{edgesr_cnn_forward.4} parent=62 // pred_check_branch
          %330 = sbr.rel (%p328) target = $region67
        $region66: #{edgesr_cnn_forward.4} parent=62 // pred_region
          %s331 = smul.u32 2, %s15
          %p332 = scmp.lt.s32.totalorder %s331, 3
          %s333 = scalar_select %p332, %s331, 3
          %s334 = smul.addr %s333, 8
          %s335 = scalar_lea.vmem %s3, %s334
        $region67: #{edgesr_cnn_forward.4} parent=62 // pred_fallthru
          _
      $region63: #{edgesr_cnn_forward.4} parent=5 // pred_fallthru
        _
    $region6: #{edgesr_cnn_forward.4} parent=1 // loop_footer
      %s13 = sadd.s32 1, %s9
    $region7: #{edgesr_cnn_forward.4} parent=1 // loop_footer_branch
      %8 = sbr.rel target = $region3
    $region8: #{edgesr_cnn_forward.4} parent=1 // loop_exit
      _

// kernel: edgesr_cnn_forward.5
$region0: #{edgesr_cnn_forward.5}
  #allocation0 [shape = 'u32[]', space=smem, size = 0x4, offset = 0x4, fixed_abs, tag = 'smem constant byte address 0x4 - core index']
  #allocation1 [shape = 'u32[144,128]{1,0:T(1,128)}', space=vmem, size = 0x12000, scoped, tag = 'internal scratch']
  %s0 = inlined_call_operand.vmem [shape: f32[32,72], index: 0, kind: input, shape index: {}]
  %s1 = inlined_call_operand.vmem [shape: f32[72,512], index: 1, kind: input, shape index: {}]
  %s2 = inlined_call_operand.vmem [shape: f32[4,512], index: 2, kind: output, shape index: {}]
  %s3 = sld [smem:[#allocation0]]
  $region64: #{edgesr_cnn_forward.5} parent=0
    _
  %s5 = ssub.s32 1, %s3
  %s6 = scalar_select 0, %s5, %s3
  $region1: #{edgesr_cnn_forward.5} parent=0
    #allocation2 [shape = 'u8[147456]{0}', space=vmem, size = 0x24000, scoped, tag = 'input window, operand 1']
    loop: start=0, step=1, limit=4
    $region2: #{edgesr_cnn_forward.5} parent=1 // loop_pre_header
      _
    $region3: #{edgesr_cnn_forward.5} parent=1 // loop_header
      %s8 = sphi 0, %s12
      %p9 = scmp.ge.s32.totalorder %s8, 4
      %s16 = sphi 0, %s16
      %s18 = sphi 0, %s16
      %s19 = sphi 0, %s18
      %s33 = sphi 0, %s19
      %s39 = sphi 0, %s41
      %s42 = sphi 0, %s39
      %s43 = sphi 0, %s42
      %s59 = sphi 0, %s43
      %s65 = sphi 0, %s67
      %s68 = sphi 0, %s65
      %s69 = sphi 0, %s68
      %s85 = sphi 0, %s69
    $region4: #{edgesr_cnn_forward.5} parent=1 // loop_header_branch
      %11 = sbr.rel (%p9) target = $region8
    $region5: #{edgesr_cnn_forward.5} parent=1 // loop_body
      %s13 = ssub.s32 %s8, 1
      %s14 = ssub.s32 %s8, 2
      %s15 = sadd.s32 %s8, 1
      %s17 = sadd.s32 %s16, 1
      %p20 = scmp.eq.s32.totalorder %s8, 1
      %p21 = scmp.ne.s32.totalorder %s16, %s18
      %p22 = scmp.eq.s32.totalorder %s8, 0
      %p23 = por %p21, %p22
      %p24 = scmp.ne.s32.totalorder %s16, %s18
      %p25 = scmp.eq.s32.totalorder %s13, 1
      %p26 = por %p24, %p25
      %p27 = scmp.ne.s32.totalorder %s18, %s19
      %p28 = scmp.eq.s32.totalorder %s13, 0
      %p29 = por %p27, %p28
      %p30 = scmp.ne.s32.totalorder %s18, %s19
      %p31 = scmp.eq.s32.totalorder %s14, 1
      %p32 = por %p30, %p31
      %p34 = scmp.ne.s32.totalorder %s19, %s33
      %p35 = scmp.eq.s32.totalorder %s14, 0
      %p36 = por %p34, %p35
      %s37 = ssub.s32 %s8, %s15
      %p38 = scmp.eq.s32.totalorder %s37, 0
      %s40 = sadd.s32 %s39, 1
      %s41 = scalar_select %p38, %s39, %s40
      %p44 = pneg %p38
      %p45 = scmp.eq.s32.totalorder %s8, 1
      %p46 = por %p44, %p45
      %p47 = scmp.ne.s32.totalorder %s39, %s42
      %p48 = scmp.eq.s32.totalorder %s8, 0
      %p49 = por %p47, %p48
      %p50 = scmp.ne.s32.totalorder %s39, %s42
      %p51 = scmp.eq.s32.totalorder %s13, 1
      %p52 = por %p50, %p51
      %p53 = scmp.ne.s32.totalorder %s42, %s43
      %p54 = scmp.eq.s32.totalorder %s13, 0
      %p55 = por %p53, %p54
      %p56 = scmp.ne.s32.totalorder %s42, %s43
      %p57 = scmp.eq.s32.totalorder %s14, 1
      %p58 = por %p56, %p57
      %p60 = scmp.ne.s32.totalorder %s43, %s59
      %p61 = scmp.eq.s32.totalorder %s14, 0
      %p62 = por %p60, %p61
      %s63 = ssub.s32 %s8, %s15
      %p64 = scmp.eq.s32.totalorder %s63, 0
      %s66 = sadd.s32 %s65, 1
      %s67 = scalar_select %p64, %s65, %s66
      %p70 = pneg %p64
      %p71 = scmp.eq.s32.totalorder %s8, 1
      %p72 = por %p70, %p71
      %p73 = scmp.ne.s32.totalorder %s65, %s68
      %p74 = scmp.eq.s32.totalorder %s8, 0
      %p75 = por %p73, %p74
      %p76 = scmp.ne.s32.totalorder %s65, %s68
      %p77 = scmp.eq.s32.totalorder %s13, 1
      %p78 = por %p76, %p77
      %p79 = scmp.ne.s32.totalorder %s68, %s69
      %p80 = scmp.eq.s32.totalorder %s13, 0
      %p81 = por %p79, %p80
      %p82 = scmp.ne.s32.totalorder %s68, %s69
      %p83 = scmp.eq.s32.totalorder %s14, 1
      %p84 = por %p82, %p83
      %p86 = scmp.ne.s32.totalorder %s69, %s85
      %p87 = scmp.eq.s32.totalorder %s14, 0
      %p88 = por %p86, %p87
      %p89 = scmp.le.s32.totalorder 1, %s8
      %p90 = scmp.lt.s32.totalorder %s8, 3
      %p91 = pnand %p89, %p90
      %p92 = pneg %p91
      // Predicated region
      $region9: #{edgesr_cnn_forward.5} parent=5 // pred_check
        _
      $region10: #{edgesr_cnn_forward.5} parent=5 // pred_check_branch
        %94 = sbr.rel (%p91) target = $region12
      $region11: #{edgesr_cnn_forward.5} parent=5 // pred_region
        %s95 = ssub.s32 %s8, 1
        // Predicated region
        $region13: #{edgesr_cnn_forward.5} parent=11 // pred_check
          %p96 = pneg %p29
        $region14: #{edgesr_cnn_forward.5} parent=11 // pred_check_branch
          %98 = sbr.rel (%p96) target = $region16
        $region15: #{edgesr_cnn_forward.5} parent=11 // pred_region
          _
        $region16: #{edgesr_cnn_forward.5} parent=11 // pred_fallthru
          _
      $region12: #{edgesr_cnn_forward.5} parent=5 // pred_fallthru
        _
      %p99 = scmp.lt.s32.totalorder %s8, 2
      // Predicated region
      $region17: #{edgesr_cnn_forward.5} parent=5 // pred_check
        %p100 = pneg %p99
      $region18: #{edgesr_cnn_forward.5} parent=5 // pred_check_branch
        %102 = sbr.rel (%p100) target = $region20
      $region19: #{edgesr_cnn_forward.5} parent=5 // pred_region
        // Predicated region
        $region21: #{edgesr_cnn_forward.5} parent=19 // pred_check
          %p103 = pneg %p49
        $region22: #{edgesr_cnn_forward.5} parent=19 // pred_check_branch
          %105 = sbr.rel (%p103) target = $region24
        $region23: #{edgesr_cnn_forward.5} parent=19 // pred_region
          %s106 = sand.u32 %s39, 1
          %s107 = sand.u32 %s39, 1
          %s108 = smul.addr %s107, 144
          %s109 = scalar_lea.vmem [#allocation2], %s108
          %s110 = smul.u32 2, %s8
          %s111 = smul.addr %s110, 8
          %s112 = scalar_lea.vmem %s1, %s111
          // Predicated region
          $region25: #{edgesr_cnn_forward.5} parent=23 // pred_check
            _
          $region26: #{edgesr_cnn_forward.5} parent=23 // pred_check_branch
            %114 = sbr.rel (0) target = $region28
          $region27: #{edgesr_cnn_forward.5} parent=23 // pred_region
            // Predicated region
            $region29: #{edgesr_cnn_forward.5} parent=27 // pred_check
              _
            $region30: #{edgesr_cnn_forward.5} parent=27 // pred_check_branch
              %116 = sbr.rel (0) target = $region32
            $region31: #{edgesr_cnn_forward.5} parent=27 // pred_region
              loop: start=0, step=1, limit=1
              $region33: #{edgesr_cnn_forward.5} parent=31 // loop_pre_header
                _
              $region34: #{edgesr_cnn_forward.5} parent=31 // loop_header
                %s118 = sphi 0, %s122
                %p119 = scmp.ge.s32.totalorder %s118, 1
                %s123 = sphi %s112, %s112
                %s124 = sphi %s109, %s109
              $region35: #{edgesr_cnn_forward.5} parent=31 // loop_header_branch
                %121 = sbr.rel (%p119) target = $region39
              $region36: #{edgesr_cnn_forward.5} parent=31 // loop_body
                %v125 = vld [vmem:[%s123] sm:$0xff]
                %126 = vst [vmem:[%s124] sm:$0xff] %v125
                %v127 = vld [vmem:[%s123 + $0x8] sm:$0xff]
                %128 = vst [vmem:[%s124 + $0x8] sm:$0xff] %v127
                %v129 = vld [vmem:[%s123 + $0x20] sm:$0xff]
                %130 = vst [vmem:[%s124 + $0x10] sm:$0xff] %v129
                %v131 = vld [vmem:[%s123 + $0x28] sm:$0xff]
                %132 = vst [vmem:[%s124 + $0x18] sm:$0xff] %v131
                %v133 = vld [vmem:[%s123 + $0x40] sm:$0xff]
                %134 = vst [vmem:[%s124 + $0x20] sm:$0xff] %v133
                %v135 = vld [vmem:[%s123 + $0x48] sm:$0xff]
                %136 = vst [vmem:[%s124 + $0x28] sm:$0xff] %v135
                %v137 = vld [vmem:[%s123 + $0x60] sm:$0xff]
                %138 = vst [vmem:[%s124 + $0x30] sm:$0xff] %v137
                %v139 = vld [vmem:[%s123 + $0x68] sm:$0xff]
                %140 = vst [vmem:[%s124 + $0x38] sm:$0xff] %v139
                %v141 = vld [vmem:[%s123 + $0x80] sm:$0xff]
                %142 = vst [vmem:[%s124 + $0x40] sm:$0xff] %v141
                %v143 = vld [vmem:[%s123 + $0x88] sm:$0xff]
                %144 = vst [vmem:[%s124 + $0x48] sm:$0xff] %v143
                %v145 = vld [vmem:[%s123 + $0xa0] sm:$0xff]
                %146 = vst [vmem:[%s124 + $0x50] sm:$0xff] %v145
                %v147 = vld [vmem:[%s123 + $0xa8] sm:$0xff]
                %148 = vst [vmem:[%s124 + $0x58] sm:$0xff] %v147
                %v149 = vld [vmem:[%s123 + $0xc0] sm:$0xff]
                %150 = vst [vmem:[%s124 + $0x60] sm:$0xff] %v149
                %v151 = vld [vmem:[%s123 + $0xc8] sm:$0xff]
                %152 = vst [vmem:[%s124 + $0x68] sm:$0xff] %v151
                %v153 = vld [vmem:[%s123 + $0xe0] sm:$0xff]
                %154 = vst [vmem:[%s124 + $0x70] sm:$0xff] %v153
                %v155 = vld [vmem:[%s123 + $0xe8] sm:$0xff]
                %156 = vst [vmem:[%s124 + $0x78] sm:$0xff] %v155
                %v157 = vld [vmem:[%s123 + $0x100] sm:$0xff]
                %158 = vst [vmem:[%s124 + $0x80] sm:$0xff] %v157
                %v159 = vld [vmem:[%s123 + $0x108] sm:$0xff]
                %160 = vst [vmem:[%s124 + $0x88] sm:$0xff] %v159
              $region37: #{edgesr_cnn_forward.5} parent=31 // loop_footer
                %s122 = sadd.s32 1, %s118
              $region38: #{edgesr_cnn_forward.5} parent=31 // loop_footer_branch
                %117 = sbr.rel target = $region34
              $region39: #{edgesr_cnn_forward.5} parent=31 // loop_exit
                _
            $region32: #{edgesr_cnn_forward.5} parent=27 // pred_fallthru
              _
            // Predicated region
            $region40: #{edgesr_cnn_forward.5} parent=27 // pred_check
              _
            $region41: #{edgesr_cnn_forward.5} parent=27 // pred_check_branch
              %162 = sbr.rel target = $region43
            $region42: #{edgesr_cnn_forward.5} parent=27 // pred_region
              _
            $region43: #{edgesr_cnn_forward.5} parent=27 // pred_fallthru
              _
          $region28: #{edgesr_cnn_forward.5} parent=23 // pred_fallthru
            _
          %163 = vnop
        $region24: #{edgesr_cnn_forward.5} parent=19 // pred_fallthru
          _
      $region20: #{edgesr_cnn_forward.5} parent=5 // pred_fallthru
        _
      %p164 = scmp.le.s32.totalorder 1, %s8
      %p165 = scmp.lt.s32.totalorder %s8, 3
      %p166 = pnand %p164, %p165
      %p167 = pneg %p166
      // Predicated region
      $region44: #{edgesr_cnn_forward.5} parent=5 // pred_check
        _
      $region45: #{edgesr_cnn_forward.5} parent=5 // pred_check_branch
        %169 = sbr.rel (%p166) target = $region47
      $region46: #{edgesr_cnn_forward.5} parent=5 // pred_region
        %s170 = ssub.s32 %s8, 1
        %s171 = sand.u32 %s42, 1
        %s172 = sand.u32 %s42, 1
        %s173 = smul.addr %s172, 144
        %s174 = scalar_lea.vmem [#allocation2], %s173
        // Predicated region
        $region48: #{edgesr_cnn_forward.5} parent=46 // pred_check
          %p175 = pneg %p55
        $region49: #{edgesr_cnn_forward.5} parent=46 // pred_check_branch
          %177 = sbr.rel (%p175) target = $region51
        $region50: #{edgesr_cnn_forward.5} parent=46 // pred_region
          _
        $region51: #{edgesr_cnn_forward.5} parent=46 // pred_fallthru
          _
        %p178 = pneg %p29
        %p179 = pneg %p26
        %s180 = sand.u32 %s42, 1
        %s181 = sand.u32 %s42, 1
        %s182 = smul.addr %s181, 144
        %s183 = scalar_lea.vmem [#allocation2], %s182
        %p184 = pneg %p55
        %p185 = pneg %p52
        %p186 = pneg %p81
        %p187 = pneg %p78
        %s188 = smul.u32 2, %s13
        %p189 = scmp.lt.s32.totalorder %s188, 3
        %s190 = scalar_select %p189, %s188, 3
        %s191 = smul.addr %s190, 4
        %s192 = scalar_lea.vmem %s2, %s191
        %s193 = smul.u32 2, %s13
        %s194 = smul.u32 2, %s13
        %p195 = scmp.lt.s32.totalorder %s194, 3
        %s196 = scalar_select %p195, %s194, 3
        %s197 = smul.addr %s196, 4
        %s198 = scalar_lea.vmem %s2, %s197
        %s199 = smul.u32 2, %s13
        %v200 = vld [vmem:[%s0] sm:$0xff]
        %v201 = vld [vmem:[%s0 + $0x8] sm:$0xff]
        %v202 = vld [vmem:[%s0 + $0x10] sm:$0xff]
        %v203 = vld [vmem:[%s0 + $0x18] sm:$0xff]
        %v204 = vld [vmem:[%s174] sm:$0xff]
        %v205 = vld [vmem:[%s174 + $0x8] sm:$0xff]
        %v206 = vld [vmem:[%s174 + $0x10] sm:$0xff]
        %v207 = vld [vmem:[%s174 + $0x18] sm:$0xff]
        %v208 = vld [vmem:[%s174 + $0x20] sm:$0xff]
        %v209 = vld [vmem:[%s174 + $0x28] sm:$0xff]
        %v210 = vld [vmem:[%s174 + $0x30] sm:$0xff]
        %v211 = vld [vmem:[%s174 + $0x38] sm:$0xff]
        %v212 = vld [vmem:[%s174 + $0x40] sm:$0xff]
        %v213 = vld [vmem:[%s174 + $0x48] sm:$0xff]
        %v214 = vld [vmem:[%s174 + $0x50] sm:$0xff]
        %v215 = vld [vmem:[%s174 + $0x58] sm:$0xff]
        %v216 = vld [vmem:[%s174 + $0x60] sm:$0xff]
        %v217 = vld [vmem:[%s174 + $0x68] sm:$0xff]
        %v218 = vld [vmem:[%s174 + $0x70] sm:$0xff]
        %v219 = vld [vmem:[%s174 + $0x78] sm:$0xff]
        %v220 = vld [vmem:[%s174 + $0x80] sm:$0xff]
        %v221 = vld [vmem:[%s174 + $0x88] sm:$0xff]
        %vm222 = vcmask 588800
        %v224 = vsel %vm222, %v200, 0
        %v227 = vsel %vm222, %v201, 0
        %v230 = vsel %vm222, %v202, 0
        %v233 = vsel %vm222, %v203, 0
        %235 = vmatprep.subr.mxu0 0.0
        %236 = vmatpush1.msra.mxu0 0.0
        %237 = vmatprep.subr.mxu0 0.0
        %238 = vmatpush1.msra.mxu0 0.0
        %239 = vmatprep.subr.mxu0 0.0
        %240 = vmatpush1.msra.mxu0 0.0
        %241 = vmatprep.subr.mxu0 0.0
        %242 = vmatpush1.msra.mxu0 0.0
        %243 = vmatprep.subr.mxu0 0.0
        %244 = vmatpush1.msra.mxu0 0.0
        %245 = vmatprep.subr.mxu0 0.0
        %246 = vmatpush1.msra.mxu0 0.0
        %247 = vmatprep.subr.mxu0 0.0
        %248 = vmatpush1.msra.mxu0 0.0
        %249 = vmatprep.subr.mxu0 %v221
        %250 = vmatpush1.msra.mxu0 %v220
        %251 = vmatprep.subr.mxu0 %v219
        %252 = vmatpush1.msra.mxu0 %v218
        %253 = vmatprep.subr.mxu0 %v217
        %254 = vmatpush1.msra.mxu0 %v216
        %255 = vmatprep.subr.mxu0 %v215
        %256 = vmatpush1.msra.mxu0 %v214
        %257 = vmatprep.subr.mxu0 %v213
        %258 = vmatpush1.msra.mxu0 %v212
        %259 = vmatprep.subr.mxu0 %v211
        %260 = vmatpush1.msra.mxu0 %v210
        %261 = vmatprep.subr.mxu0 %v209
        %262 = vmatpush1.msra.mxu0 %v208
        %263 = vmatprep.subr.mxu0 %v207
        %264 = vmatpush1.msra.mxu0 %v206
        %265 = vmatprep.subr.mxu0 %v205
        %266 = vmatpush1.msra.mxu0 %v204
        %267 = vmatprep.subr.mxu0 0.0
        %268 = vmatpush2.msra.mxu0 0.0
        %269 = vmatprep.subr.mxu0 0.0
        %270 = vmatpush2.msra.mxu0 0.0
        %271 = vmatprep.subr.mxu0 0.0
        %272 = vmatpush2.msra.mxu0 0.0
        %273 = vmatprep.subr.mxu0 0.0
        %274 = vmatpush2.msra.mxu0 0.0
        %275 = vmatprep.subr.mxu0 0.0
        %276 = vmatpush2.msra.mxu0 0.0
        %277 = vmatprep.subr.mxu0 0.0
        %278 = vmatpush2.msra.mxu0 0.0
        %279 = vmatprep.subr.mxu0 0.0
        %280 = vmatpush2.msra.mxu0 0.0
        %281 = vmatprep.subr.mxu0 0.0
        %282 = vmatpush2.msra.mxu0 0.0
        %283 = vmatprep.subr.mxu0 0.0
        %284 = vmatpush2.msra.mxu0 0.0
        %285 = vmatprep.subr.mxu0 0.0
        %286 = vmatpush2.msra.mxu0 0.0
        %287 = vmatprep.subr.mxu0 0.0
        %288 = vmatpush2.msra.mxu0 0.0
        %289 = vmatprep.subr.mxu0 0.0
        %290 = vmatpush2.msra.mxu0 0.0
        %291 = vmatprep.subr.mxu0 0.0
        %292 = vmatpush2.msra.mxu0 0.0
        %293 = vmatprep.subr.mxu0 0.0
        %294 = vmatpush2.msra.mxu0 0.0
        %295 = vmatprep.subr.mxu0 0.0
        %296 = vmatpush2.msra.mxu0 0.0
        %297 = vmatprep.subr.mxu0 0.0
        %298 = vmatpush2.msra.mxu0 0.0
        %299 = vmatprep.mubr.f32.mxu0 0.0
        %300 = vmatmul.mubr.f32.gmra.mxu0 %v224
        %v301 = vpop.f32.mrf.mxu0
        %v302 = vadd.f32 0.0, %v301
        %v303 = vpop.f32.mrf.mxu0
        %v304 = vadd.f32 0.0, %v303
        %305 = vmatprep.mubr.f32.mxu0 0.0
        %306 = vmatmul.mubr.f32.gmra.mxu0 %v227
        %v307 = vpop.f32.mrf.mxu0
        %v308 = vadd.f32 0.0, %v307
        %v309 = vpop.f32.mrf.mxu0
        %v310 = vadd.f32 0.0, %v309
        %311 = vmatprep.mubr.f32.mxu0 0.0
        %312 = vmatmul.mubr.f32.gmra.mxu0 %v230
        %v313 = vpop.f32.mrf.mxu0
        %v314 = vadd.f32 0.0, %v313
        %v315 = vpop.f32.mrf.mxu0
        %v316 = vadd.f32 0.0, %v315
        %317 = vmatprep.mubr.f32.mxu0 0.0
        %318 = vmatmul.mubr.f32.gmra.mxu0 %v233
        %v319 = vpop.f32.mrf.mxu0
        %v320 = vadd.f32 0.0, %v319
        %v321 = vpop.f32.mrf.mxu0
        %v322 = vadd.f32 0.0, %v321
        %323 = vdwg.mxu0
        %v324 = vmul.f32 %v314, %v314
        %v325 = vmul.f32 %v316, %v316
        %v326 = vmul.f32 %v320, %v320
        %v327 = vmul.f32 %v322, %v322
        %v330 = vrot.slane %v324, 4
        %v331 = vrot.slane %v325, 4
        %v334 = vmax.f32 %v324, %v330
        %v335 = vmax.f32 %v325, %v331
        %v336 = vmax.f32 %v334, %v326
        %v337 = vmax.f32 %v335, %v327
        %v340 = vrot.slane %v326, 4
        %v341 = vrot.slane %v327, 4
        %v344 = vmax.f32 %v336, %v340
        %v345 = vmax.f32 %v337, %v341
        %v348 = vrot.slane %v344, 4
        %v349 = vrot.slane %v345, 4
        %vm352 = vcmask 1043456
        %v353 = vsel %vm352, %v344, %v348
        %v354 = vsel %vm352, %v345, %v349
        %v355 = vsub.f32 %v324, %v353
        %v356 = vsub.f32 %v325, %v354
        %v357 = vsub.f32 %v326, %v353
        %v358 = vsub.f32 %v327, %v354
        %v359 = vmul.f32 %v355, 1.442695
        %v360 = vpow.pop %v359
        %v361 = vmul.f32 %v356, 1.442695
        %v362 = vpow.pop %v361
        %v363 = vmul.f32 %v357, 1.442695
        %v364 = vpow.pop %v363
        %v365 = vmul.f32 %v358, 1.442695
        %v366 = vpow.pop %v365
        %v367 = vmul.f32 %v302, %v360
        %v368 = vmul.f32 %v304, %v362
        %v369 = vmul.f32 %v308, %v364
        %v370 = vmul.f32 %v310, %v366
        %v373 = vrot.slane %v360, 4
        %v374 = vrot.slane %v362, 4
        %v377 = vadd.f32 %v360, %v373
        %v378 = vadd.f32 %v362, %v374
        %v381 = vrot.slane %v367, 4
        %v382 = vrot.slane %v368, 4
        %v385 = vadd.f32 %v367, %v381
        %v386 = vadd.f32 %v368, %v382
        %v387 = vadd.f32 %v377, %v364
        %v388 = vadd.f32 %v378, %v366
        %v389 = vadd.f32 %v385, %v369
        %v390 = vadd.f32 %v386, %v370
        %v393 = vrot.slane %v364, 4
        %v394 = vrot.slane %v366, 4
        %v397 = vadd.f32 %v387, %v393
        %v398 = vadd.f32 %v388, %v394
        %v401 = vrot.slane %v369, 4
        %v402 = vrot.slane %v370, 4
        %v405 = vadd.f32 %v389, %v401
        %v406 = vadd.f32 %v390, %v402
        %v407 = vrcp.pop %v397
        %v408 = vmul.f32 %v405, %v407
        %v409 = vrcp.pop %v398
        %v410 = vmul.f32 %v406, %v409
        %v413 = vcombine.low %v408, %v410
        %415 = vst [vmem:[%s198] sm:$0xff] %v413
        %s416 = smul.u32 2, %s13
        %p417 = scmp.lt.s32.totalorder %s416, 3
        %s418 = scalar_select %p417, %s416, 3
        %s419 = smul.addr %s418, 4
        %s420 = scalar_lea.vmem %s2, %s419
        // Predicated region
        $region52: #{edgesr_cnn_forward.5} parent=46 // pred_check
          %p421 = pneg %p78
        $region53: #{edgesr_cnn_forward.5} parent=46 // pred_check_branch
          %423 = sbr.rel (%p421) target = $region55
        $region54: #{edgesr_cnn_forward.5} parent=46 // pred_region
          %s424 = smul.u32 2, %s13
        $region55: #{edgesr_cnn_forward.5} parent=46 // pred_fallthru
          _
      $region47: #{edgesr_cnn_forward.5} parent=5 // pred_fallthru
        _
      %p425 = scmp.le.s32.totalorder 2, %s8
      // Predicated region
      $region56: #{edgesr_cnn_forward.5} parent=5 // pred_check
        %p426 = pneg %p425
      $region57: #{edgesr_cnn_forward.5} parent=5 // pred_check_branch
        %428 = sbr.rel (%p426) target = $region59
      $region58: #{edgesr_cnn_forward.5} parent=5 // pred_region
        %s429 = ssub.s32 %s8, 2
        // Predicated region
        $region60: #{edgesr_cnn_forward.5} parent=58 // pred_check
          %p430 = pneg %p84
        $region61: #{edgesr_cnn_forward.5} parent=58 // pred_check_branch
          %432 = sbr.rel (%p430) target = $region63
        $region62: #{edgesr_cnn_forward.5} parent=58 // pred_region
          %s433 = smul.u32 2, %s14
          %p434 = scmp.lt.s32.totalorder %s433, 3
          %s435 = scalar_select %p434, %s433, 3
          %s436 = smul.addr %s435, 4
          %s437 = scalar_lea.vmem %s2, %s436
        $region63: #{edgesr_cnn_forward.5} parent=58 // pred_fallthru
          _
      $region59: #{edgesr_cnn_forward.5} parent=5 // pred_fallthru
        _
    $region6: #{edgesr_cnn_forward.5} parent=1 // loop_footer
      %s12 = sadd.s32 1, %s8
    $region7: #{edgesr_cnn_forward.5} parent=1 // loop_footer_branch
      %7 = sbr.rel target = $region3
    $region8: #{edgesr_cnn_forward.5} parent=1 // loop_exit
      _

</llo_original>
